<compile_context>
chip_gen: v7x
topology: tpu7x:2x2x1
jax: 0.10.0
libtpu: 0.0.40
codegen_flags: <defaults>
</compile_context>

<pallas_src>
import jax
import jax.numpy as jnp
from jax.experimental import pallas as pl
from jax.experimental.pallas import tpu as pltpu


def _softmax_onehot_kernel(logits_ref, labels_ref, sm_ref, oh_ref):
    # logits_ref: (TN, C)  labels_ref: (TN, 1) int32
    x = logits_ref[...].astype(jnp.float32)                      # torch: logits.float()
    C = x.shape[-1]

    # ---- numerically stable softmax over the class (last / lane) axis ----
    m = jnp.max(x, axis=-1, keepdims=True)
    e = jnp.exp(x - m)
    denom = jnp.sum(e, axis=-1, keepdims=True)
    sm_ref[...] = e * pl.reciprocal(denom)                       # exact 1/denom, then multiply

    # ---- one-hot of clamped labels, built in-kernel (no HBM one-hot traffic) ----
    labels = jnp.clip(labels_ref[...], 0, C - 1)                 # torch.clamp(labels, 0, C-1)
    col = jax.lax.broadcasted_iota(jnp.int32, x.shape, 1)        # (TN, C) column ids
    # on_value=1.0, off_value=0.0  =>  plain float32 one-hot
    oh_ref[...] = (col == labels).astype(jnp.float32)


def softmax_with_onehot(logits, labels, *, row_tile=512):
    """Pallas implementation of Softmax.forward(logits, labels)."""
    N, C = logits.shape
    # Tile the row axis; keep the full class axis per block (lane-dense).
    tn = N if N <= row_tile else row_tile                        # full dim OK; else multiple of 8
    labels2d = labels.astype(jnp.int32).reshape(N, 1)

    grid = (pl.cdiv(N, tn),)
    sm, oh = pl.pallas_call(
        _softmax_onehot_kernel,
        out_shape=(
            jax.ShapeDtypeStruct((N, C), jnp.float32),           # softmax_result
            jax.ShapeDtypeStruct((N, C), jnp.float32),           # one_hot_label
        ),
        grid=grid,
        in_specs=[
            pl.BlockSpec((tn, C), lambda i: (i, 0)),             # logits row-tile
            pl.BlockSpec((tn, 1), lambda i: (i, 0)),             # labels row-tile (int32 column)
        ],
        out_specs=(
            pl.BlockSpec((tn, C), lambda i: (i, 0)),
            pl.BlockSpec((tn, C), lambda i: (i, 0)),
        ),
        compiler_params=pltpu.CompilerParams(
            dimension_semantics=("parallel",),                   # row tiles are independent
        ),
    )(logits, labels2d)
    return sm, oh


if __name__ == "__main__":
    # Small shapes consistent with the module: logits (N, C), labels (N,)
    N, C = 8, 32

    key = jax.random.PRNGKey(0)
    k_logits, k_labels = jax.random.split(key)
    logits = jax.random.normal(k_logits, (N, C), jnp.float32)
    # include out-of-range labels to exercise the clamp path (torch.clamp(labels, 0, C-1))
    labels = jax.random.randint(k_labels, (N,), -2, C + 2, dtype=jnp.int32)

    sm, oh = softmax_with_onehot(logits, labels)
    sm = jax.block_until_ready(sm)
    oh = jax.block_until_ready(oh)

    # ---- pure-JAX reference check (same math as the torch module) ----
    ref_sm = jax.nn.softmax(logits.astype(jnp.float32), axis=-1)
    clamped = jnp.clip(labels, 0, C - 1)
    ref_oh = jax.nn.one_hot(clamped, C, dtype=jnp.float32)

    assert sm.shape == (N, C) and oh.shape == (N, C)
    assert jnp.allclose(sm, ref_sm, atol=1e-6, rtol=1e-6)
    assert jnp.allclose(oh, ref_oh)
    assert jnp.allclose(jnp.sum(sm, axis=-1), jnp.ones((N,), jnp.float32), atol=1e-6)

    print("KERNEL_OK")
</pallas_src>

<mosaic_0001>
module attributes {stable_mosaic.version = 11 : i64} {
  func.func @_softmax_onehot_kernel(%arg0: i32, %arg1: memref<8x32xf32, #tpu.memory_space<vmem>>, %arg2: memref<8x1xi32, #tpu.memory_space<vmem>>, %arg3: memref<8x32xf32, #tpu.memory_space<vmem>>, %arg4: memref<8x32xf32, #tpu.memory_space<vmem>>) attributes {dimension_semantics = [#tpu.dimension_semantics<parallel>], iteration_bounds = array<i64: 1>, scalar_prefetch = 0 : i64, scratch_operands = 0 : i64, tpu.core_type = #tpu.core_type<tc>, window_params = [{transform_indices = @transform_0, window_bounds = array<i64: 8, 32>}, {transform_indices = @transform_1, window_bounds = array<i64: 8, 1>}, {transform_indices = @transform_2, window_bounds = array<i64: 8, 32>}, {transform_indices = @transform_3, window_bounds = array<i64: 8, 32>}]} {
    %c0 = arith.constant 0 : index
    %c0_0 = arith.constant 0 : index
    %0 = vector.load %arg1[%c0, %c0_0] : memref<8x32xf32, #tpu.memory_space<vmem>>, vector<8x32xf32>
    %cst = arith.constant dense<0xFF800000> : vector<8xf32>
    %1 = vector.multi_reduction <maximumf>, %0, %cst [1] : vector<8x32xf32> to vector<8xf32>
    %2 = vector.shape_cast %1 : vector<8xf32> to vector<8x1xf32>
    %3 = vector.broadcast %2 : vector<8x1xf32> to vector<8x32xf32>
    %4 = arith.subf %0, %3 : vector<8x32xf32>
    %5 = math.exp %4 : vector<8x32xf32>
    %cst_1 = arith.constant dense<0.000000e+00> : vector<8xf32>
    %6 = vector.multi_reduction <add>, %5, %cst_1 [1] : vector<8x32xf32> to vector<8xf32>
    %7 = vector.shape_cast %6 : vector<8xf32> to vector<8x1xf32>
    %8 = tpu.reciprocal %7 : vector<8x1xf32> -> vector<8x1xf32>
    %9 = vector.broadcast %8 : vector<8x1xf32> to vector<8x32xf32>
    %10 = arith.mulf %5, %9 : vector<8x32xf32>
    %c0_2 = arith.constant 0 : index
    %c0_3 = arith.constant 0 : index
    %11 = vector.load %arg3[%c0_2, %c0_3] : memref<8x32xf32, #tpu.memory_space<vmem>>, vector<8x32xf32>
    tpu.vector_store %arg3[%c0_2, %c0_3], %10 {strides = array<i32>} : memref<8x32xf32, #tpu.memory_space<vmem>>, vector<8x32xf32>,
    %c0_4 = arith.constant 0 : index
    %c0_5 = arith.constant 0 : index
    %12 = vector.load %arg2[%c0_4, %c0_5] : memref<8x1xi32, #tpu.memory_space<vmem>>, vector<8x1xi32>
    %c0_i32 = arith.constant 0 : i32
    %c31_i32 = arith.constant 31 : i32
    %13 = vector.broadcast %c0_i32 : i32 to vector<8x1xi32>
    %14 = arith.maxsi %13, %12 : vector<8x1xi32>
    %15 = vector.broadcast %c31_i32 : i32 to vector<8x1xi32>
    %16 = arith.minsi %15, %14 : vector<8x1xi32>
    %17 = tpu.iota {dimensions = array<i32: 1>} : vector<8x32xi32>
    %18 = vector.broadcast %16 : vector<8x1xi32> to vector<8x32xi32>
    %19 = arith.cmpi eq, %17, %18 : vector<8x32xi32>
    %20 = arith.extui %19 : vector<8x32xi1> to vector<8x32xi32>
    %21 = arith.sitofp %20 : vector<8x32xi32> to vector<8x32xf32>
    %c0_6 = arith.constant 0 : index
    %c0_7 = arith.constant 0 : index
    %22 = vector.load %arg4[%c0_6, %c0_7] : memref<8x32xf32, #tpu.memory_space<vmem>>, vector<8x32xf32>
    tpu.vector_store %arg4[%c0_6, %c0_7], %21 {strides = array<i32>} : memref<8x32xf32, #tpu.memory_space<vmem>>, vector<8x32xf32>,
    return
  }
  func.func @transform_0(%arg0: i32) -> (i32, i32) {
    %c0_i32 = arith.constant 0 : i32
    %c0_i32_0 = arith.constant 0 : i32
    return %arg0, %c0_i32 : i32, i32
  }
  func.func @transform_1(%arg0: i32) -> (i32, i32) {
    %c0_i32 = arith.constant 0 : i32
    %c0_i32_0 = arith.constant 0 : i32
    return %arg0, %c0_i32 : i32, i32
  }
  func.func @transform_2(%arg0: i32) -> (i32, i32) {
    %c0_i32 = arith.constant 0 : i32
    %c0_i32_0 = arith.constant 0 : i32
    return %arg0, %c0_i32 : i32, i32
  }
  func.func @transform_3(%arg0: i32) -> (i32, i32) {
    %c0_i32 = arith.constant 0 : i32
    %c0_i32_0 = arith.constant 0 : i32
    return %arg0, %c0_i32 : i32, i32
  }
}

</mosaic_0001>

<llo_original>
// kernel: tpu_custom_call.1
$region0: #{tpu_custom_call.1}
  #allocation0 [shape = 'u32[]', space=smem, size = 0x4, offset = 0x4, fixed_abs, tag = 'smem constant byte address 0x4 - core index']
  #allocation1 [shape = 'u32[144,128]{1,0:T(1,128)}', space=vmem, size = 0x12000, scoped, tag = 'internal scratch']
  %s0 = inlined_call_operand.vmem [shape: f32[8,32], index: 0, kind: input, shape index: {}]
  %s1 = inlined_call_operand.vmem [shape: s32[8,1], index: 1, kind: input, shape index: {}]
  %s2 = inlined_call_operand.hbm [shape: f32[8,32], index: 2, kind: output, shape index: {0}]
  %s3 = inlined_call_operand.hbm [shape: f32[8,32], index: 3, kind: output, shape index: {1}]
  %4 = xla_tuple %s2, %s3
  %s5 = sld [smem:[#allocation0]]
  $region26: #{tpu_custom_call.1} parent=0
    _
  %s7 = ssub.s32 1, %s5
  %s8 = scalar_select 0, %s7, %s5
  $region1: #{tpu_custom_call.1} parent=0
    #allocation2 [shape = 'u8[4096]{0}', space=vmem, size = 0x1000, scoped, tag = 'output window, operand 0, single buffered']
    #allocation3 [shape = 's32[1]{0}', space=sflag, size = 0x4, scoped, tag = 'scoped memory for tpu_custom_call.1']
    #allocation4 [shape = 'u8[4096]{0}', space=vmem, size = 0x1000, scoped, tag = 'output window, operand 1, single buffered']
    #allocation5 [shape = 's32[1]{0}', space=sflag, size = 0x4, scoped, tag = 'scoped memory for tpu_custom_call.1']
    %9 = vsyncpa [#allocation3], 0
    %10 = vsyncpa [#allocation5], 0
    // Predicated region
    $region2: #{tpu_custom_call.1} parent=1 // pred_check
      _
    $region3: #{tpu_custom_call.1} parent=1 // pred_check_branch
      %12 = sbr.rel (0) target = $region5
    $region4: #{tpu_custom_call.1} parent=1 // pred_region
      _
    $region5: #{tpu_custom_call.1} parent=1 // pred_fallthru
      _
    // Predicated region
    $region6: #{tpu_custom_call.1} parent=1 // pred_check
      _
    $region7: #{tpu_custom_call.1} parent=1 // pred_check_branch
      %14 = sbr.rel (0) target = $region9
    $region8: #{tpu_custom_call.1} parent=1 // pred_region
      _
    $region9: #{tpu_custom_call.1} parent=1 // pred_fallthru
      _
    %v15 = vld [vmem:[%s0] sm:$0xff]
    %vm16 = vcmask 261120
    %v17 = vsel %vm16, %v15, -inf
    %18 = vmax.xlane.f32.xlu0 %v17
    %v19 = vpop.xlane.xlu0 %18
    %v20 = vsub.f32 %v15, %v19
    %v21 = vmul.f32 %v20, 1.442695
    %v22 = vpow.pop %v21
    %v23 = vsel %vm16, %v22, 0.0
    %24 = vadd.xlane.f32.xlu0 %v23
    %v25 = vpop.xlane.xlu0 %24
    %v26 = vrcp.pop %v25
    %v27 = vmul.f32 %v22, %v26
    %28 = vst.msk [vmem:[#allocation2] sm:$0xff] %vm16, %v27
    %v29 = vld [vmem:[%s1] sm:$0xff]
    %vm30 = vcmp.gt.s32.totalorder %v29, 0
    %v31 = vsel %vm30, %v29, 0
    %vm32 = vcmp.lt.s32.totalorder %v31, 31
    %v33 = vsel %vm32, %v31, 31
    %v34 = vlaneseq
    %v35 = vand.u32 %v34, 127
    %36 = vset.pattern.permute.xlu0 0
    %37 = vperm.xlu0 %36, %v33
    %v38 = vpop.permute.xlu0 %37
    %vm39 = vcmp.eq.s32.totalorder %v35, %v38
    %v40 = vsel %vm39, 1, 0
    %v41 = vcvt.s32.f32 %v40
    %42 = vst.msk [vmem:[#allocation4] sm:$0xff] %vm16, %v41
    // Predicated region
    $region10: #{tpu_custom_call.1} parent=1 // pred_check
      _
    $region11: #{tpu_custom_call.1} parent=1 // pred_check_branch
      %44 = sbr.rel (0) target = $region13
    $region12: #{tpu_custom_call.1} parent=1 // pred_region
      %s46 = ssub.s32 128, 128
      %47 = vsyncadd [#allocation3], %s46
      %s49 = sshll.u32 [#allocation2], 4
      %s50 = int_to_ptr.vmem [resolvable:$true] %s49
      %52 = dma.vmem_to_hbm [thread:$0]  %s50, 128, %s2, [#allocation3]
    $region13: #{tpu_custom_call.1} parent=1 // pred_fallthru
      _
    // Predicated region
    $region14: #{tpu_custom_call.1} parent=1 // pred_check
      _
    $region15: #{tpu_custom_call.1} parent=1 // pred_check_branch
      %54 = sbr.rel (0) target = $region17
    $region16: #{tpu_custom_call.1} parent=1 // pred_region
      %s56 = ssub.s32 128, 128
      %57 = vsyncadd [#allocation5], %s56
      %s59 = sshll.u32 [#allocation4], 4
      %s60 = int_to_ptr.vmem [resolvable:$true] %s59
      %62 = dma.vmem_to_hbm [thread:$0]  %s60, 128, %s3, [#allocation5]
    $region17: #{tpu_custom_call.1} parent=1 // pred_fallthru
      _
    // Predicated region
    $region18: #{tpu_custom_call.1} parent=1 // pred_check
      _
    $region19: #{tpu_custom_call.1} parent=1 // pred_check_branch
      %64 = sbr.rel (0) target = $region21
    $region20: #{tpu_custom_call.1} parent=1 // pred_region
      %65 = dma.done [#allocation3], 128
    $region21: #{tpu_custom_call.1} parent=1 // pred_fallthru
      _
    // Predicated region
    $region22: #{tpu_custom_call.1} parent=1 // pred_check
      _
    $region23: #{tpu_custom_call.1} parent=1 // pred_check_branch
      %67 = sbr.rel (0) target = $region25
    $region24: #{tpu_custom_call.1} parent=1 // pred_region
      %68 = dma.done [#allocation5], 128
    $region25: #{tpu_custom_call.1} parent=1 // pred_fallthru
      _
    %69 = vsyncpa [#allocation3], 1
    %70 = vsyncpa [#allocation5], 1

</llo_original>
